<compile_context>
chip_gen: v7x
topology: tpu7x:2x2x1
jax: 0.10.0
libtpu: 0.0.40
codegen_flags: <defaults>
</compile_context>

<pallas_src>
import functools

import jax
import jax.numpy as jnp
from jax.experimental import pallas as pl
from jax.experimental.pallas import tpu as pltpu


def _round_up(x, m):
    return ((int(x) + m - 1) // m) * m


def _pow_gamma(x, gamma):
    """x ** gamma for x >= 0 with cheap VALU/sqrt paths for common gammas."""
    g = float(gamma)
    if g == 2.5:
        return x * x * jnp.sqrt(x)            # 2 VALU muls + 1 sqrt
    if g == int(g) and 1 <= int(g) <= 8:
        r = x
        for _ in range(int(g) - 1):           # pure VALU
            r = r * x
        return r
    return x ** g                              # generic exp(g*log(x)) fallback


def _focal_loss_kernel(logits_ref, targets_ref, out_ref, *, gamma, alpha, n, tile_n):
    # logits_ref: (C, 8, TN8) — class-major, each class row is a full-vreg slab
    # targets_ref: (8, TN8) int32
    c, sub, tn8 = logits_ref.shape
    tgt = targets_ref[...]

    rows = [logits_ref[k].astype(jnp.float32) for k in range(c)]   # C x (8, TN8)

    # Running max over classes: elementwise max on full vregs (no XLU reduce).
    m = rows[0]
    for r in rows[1:]:
        m = jnp.maximum(m, r)

    es = [jnp.exp(r - m) for r in rows]
    sumexp = es[0]
    for e in es[1:]:
        sumexp = sumexp + e

    # Unrolled compare/select instead of iota/one-hot/masked-reduce.
    tgt_logit = rows[0]
    tgt_e = es[0]
    at = jnp.full_like(m, float(alpha[0]))
    for k in range(1, c):
        sel = tgt == k
        tgt_logit = jnp.where(sel, rows[k], tgt_logit)
        tgt_e = jnp.where(sel, es[k], tgt_e)
        at = jnp.where(sel, jnp.float32(alpha[k]), at)

    # ce = logsumexp - target logit ; pt-related terms reuse the existing exps.
    ce = (m - tgt_logit) + jnp.log(sumexp)
    inv_sumexp = pl.reciprocal(sumexp, approx=True)
    inv_sumexp = inv_sumexp * (2.0 - sumexp * inv_sumexp)     # 1 Newton step (VALU)
    one_minus_pt = (sumexp - tgt_e) * inv_sumexp              # stable 1 - pt, >= 0

    focal = at * _pow_gamma(one_minus_pt, gamma) * ce         # (8, TN8)

    # Mask padded / ragged-tile columns (n, tile_n are static Python ints).
    col = (pl.program_id(0) * tile_n
           + jax.lax.broadcasted_iota(jnp.int32, (sub, tn8), 0) * tn8
           + jax.lax.broadcasted_iota(jnp.int32, (sub, tn8), 1))
    focal = jnp.where(col < n, focal, 0.0)

    # One partial sum per tile; the mean (divide by true N) happens outside.
    out_ref[...] = jnp.sum(focal).reshape(1, 1, 1)


def focal_loss(logits, targets, alpha=(1.0, 1.0, 1.0), gamma=2.5, tile_n=65536):
    """Pallas implementation of FocalLoss.forward (reduction='mean')."""
    n, c = logits.shape
    alpha = tuple(float(a) for a in alpha)
    assert len(alpha) == c, "alpha must have one weight per class"

    # Tile size: multiple of 1024 (= 8 sublanes x 128 lanes) so blocks are full
    # (8, 128) vregs; large enough to amortize per-step overhead, clamped so a
    # tiny batch doesn't over-pad and so large batches get >= 2 tiles (v7x has
    # two TensorCores sharing the "parallel" grid axis).
    tile_n = max(1024, min(int(tile_n), 131072))
    tile_n = (tile_n // 1024) * 1024
    if n > 2048:
        tile_n = min(tile_n, _round_up(pl.cdiv(n, 2), 1024))
    tile_n = min(tile_n, _round_up(n, 1024))
    num_tiles = pl.cdiv(n, tile_n)
    n_pad = num_tiles * tile_n
    tn8 = tile_n // 8

    # Class-major, full-vreg layout.  transpose+pad+reshape is one XLA copy
    # pass (reshape is contiguous/free); padded logits columns are zeros, and
    # the kernel masks them anyway.
    logits_t = jnp.transpose(logits, (1, 0))                      # (C, N)
    logits_p = jnp.pad(logits_t, ((0, 0), (0, n_pad - n)))
    logits3 = logits_p.reshape(c, num_tiles * 8, tn8)
    targets_p = jnp.pad(targets.astype(jnp.int32), (0, n_pad - n),
                        constant_values=c)
    targets2 = targets_p.reshape(num_tiles * 8, tn8)

    kernel = functools.partial(_focal_loss_kernel, gamma=float(gamma),
                               alpha=alpha, n=int(n), tile_n=int(tile_n))

    block_bytes = (c * 4 + 4) * tile_n
    vmem_limit = int(min(64 * 1024 * 1024, max(32 * 1024 * 1024, 24 * block_bytes)))

    cost = pl.CostEstimate(
        flops=int(n_pad) * (10 * c + 16),
        transcendentals=int(n_pad) * (c + 2),
        bytes_accessed=int(n_pad) * (c * 4 + 4) + int(num_tiles) * 4,
    )

    partials = pl.pallas_call(
        kernel,
        out_shape=jax.ShapeDtypeStruct((num_tiles, 1, 1), jnp.float32),
        grid=(num_tiles,),
        in_specs=[
            pl.BlockSpec((c, 8, tn8), lambda i: (0, i, 0)),   # logits (C, 8, TN8)
            pl.BlockSpec((8, tn8), lambda i: (i, 0)),         # targets (8, TN8)
        ],
        out_specs=pl.BlockSpec((1, 1, 1), lambda i: (i, 0, 0)),
        compiler_params=pltpu.CompilerParams(
            dimension_semantics=("parallel",),                # split across TCs
            vmem_limit_bytes=vmem_limit,
        ),
        cost_estimate=cost,
    )(logits3, targets2)

    # reduction='mean': divide by the TRUE batch size, not the padded one.
    return jnp.sum(partials) / jnp.float32(n)


def _focal_loss_ref(logits, targets, alpha=(1.0, 1.0, 1.0), gamma=2.5):
    """Pure-JAX reference mirroring the PyTorch module."""
    logits = logits.astype(jnp.float32)
    lse = jax.nn.logsumexp(logits, axis=-1)
    tgt_logit = jnp.take_along_axis(
        logits, targets[:, None].astype(jnp.int32), axis=-1
    )[:, 0]
    ce = lse - tgt_logit
    pt = jnp.exp(-ce)
    at = jnp.asarray(alpha, dtype=jnp.float32)[targets]
    return jnp.mean(at * (1.0 - pt) ** gamma * ce)


if __name__ == "__main__":
    key = jax.random.PRNGKey(0)
    k_logits, k_tgt, k_logits2, k_tgt2 = jax.random.split(key, 4)

    # Small case (matches the module's default 3 classes).
    N, C = 8, 3
    logits = jax.random.normal(k_logits, (N, C), dtype=jnp.float32)
    targets = jax.random.randint(k_tgt, (N,), 0, C, dtype=jnp.int32)
    alpha = (1.0, 1.0, 1.0)
    gamma = 2.5

    out = jax.block_until_ready(focal_loss(logits, targets, alpha=alpha, gamma=gamma))
    ref = _focal_loss_ref(logits, targets, alpha=alpha, gamma=gamma)
    assert jnp.allclose(out, ref, atol=1e-5, rtol=1e-5), (out, ref)

    # Multi-tile + ragged last tile (3 tiles of 1024, last tile masked).
    N2 = 3000
    logits2 = jax.random.normal(k_logits2, (N2, C), dtype=jnp.float32)
    targets2 = jax.random.randint(k_tgt2, (N2,), 0, C, dtype=jnp.int32)
    out2 = jax.block_until_ready(
        focal_loss(logits2, targets2, alpha=(0.5, 1.0, 2.0), gamma=gamma, tile_n=1024)
    )
    ref2 = _focal_loss_ref(logits2, targets2, alpha=(0.5, 1.0, 2.0), gamma=gamma)
    assert jnp.allclose(out2, ref2, atol=1e-5, rtol=1e-5), (out2, ref2)

    print("KERNEL_OK")
</pallas_src>

<mosaic_0001>
module attributes {stable_mosaic.version = 11 : i64} {
  func.func @_focal_loss_kernel(%arg0: i32, %arg1: memref<3x8x128xf32, #tpu.memory_space<vmem>>, %arg2: memref<8x128xi32, #tpu.memory_space<vmem>>, %arg3: memref<1x1x1xf32, #tpu.memory_space<vmem>>) attributes {dimension_semantics = [#tpu.dimension_semantics<parallel>], iteration_bounds = array<i64: 1>, scalar_prefetch = 0 : i64, scratch_operands = 0 : i64, tpu.core_type = #tpu.core_type<tc>, window_params = [{transform_indices = @transform_0, window_bounds = array<i64: 3, 8, 128>}, {transform_indices = @transform_1, window_bounds = array<i64: 8, 128>}, {transform_indices = @transform_2, window_bounds = array<i64: 1, 1, 1>}]} {
    %c0 = arith.constant 0 : index
    %c0_0 = arith.constant 0 : index
    %0 = vector.load %arg2[%c0, %c0_0] : memref<8x128xi32, #tpu.memory_space<vmem>>, vector<8x128xi32>
    %c0_1 = arith.constant 0 : index
    %c0_2 = arith.constant 0 : index
    %c0_3 = arith.constant 0 : index
    %1 = vector.load %arg1[%c0_1, %c0_2, %c0_3] : memref<3x8x128xf32, #tpu.memory_space<vmem>>, vector<1x8x128xf32>
    %2 = vector.shape_cast %1 : vector<1x8x128xf32> to vector<8x128xf32>
    %c1 = arith.constant 1 : index
    %c0_4 = arith.constant 0 : index
    %c0_5 = arith.constant 0 : index
    %3 = vector.load %arg1[%c1, %c0_4, %c0_5] : memref<3x8x128xf32, #tpu.memory_space<vmem>>, vector<1x8x128xf32>
    %4 = vector.shape_cast %3 : vector<1x8x128xf32> to vector<8x128xf32>
    %c2 = arith.constant 2 : index
    %c0_6 = arith.constant 0 : index
    %c0_7 = arith.constant 0 : index
    %5 = vector.load %arg1[%c2, %c0_6, %c0_7] : memref<3x8x128xf32, #tpu.memory_space<vmem>>, vector<1x8x128xf32>
    %6 = vector.shape_cast %5 : vector<1x8x128xf32> to vector<8x128xf32>
    %7 = arith.maximumf %2, %4 : vector<8x128xf32>
    %8 = arith.maximumf %7, %6 : vector<8x128xf32>
    %9 = arith.subf %2, %8 : vector<8x128xf32>
    %10 = math.exp %9 : vector<8x128xf32>
    %11 = arith.subf %4, %8 : vector<8x128xf32>
    %12 = math.exp %11 : vector<8x128xf32>
    %13 = arith.subf %6, %8 : vector<8x128xf32>
    %14 = math.exp %13 : vector<8x128xf32>
    %15 = arith.addf %10, %12 : vector<8x128xf32>
    %16 = arith.addf %15, %14 : vector<8x128xf32>
    %cst = arith.constant 1.000000e+00 : f32
    %17 = vector.broadcast %cst : f32 to vector<8x128xf32>
    %c1_i32 = arith.constant 1 : i32
    %18 = vector.broadcast %c1_i32 : i32 to vector<8x128xi32>
    %19 = arith.cmpi eq, %0, %18 : vector<8x128xi32>
    %20 = arith.select %19, %4, %2 : vector<8x128xi1>, vector<8x128xf32>
    %21 = arith.select %19, %12, %10 : vector<8x128xi1>, vector<8x128xf32>
    %cst_8 = arith.constant 1.000000e+00 : f32
    %22 = vector.broadcast %cst_8 : f32 to vector<8x128xf32>
    %23 = arith.select %19, %22, %17 : vector<8x128xi1>, vector<8x128xf32>
    %c2_i32 = arith.constant 2 : i32
    %24 = vector.broadcast %c2_i32 : i32 to vector<8x128xi32>
    %25 = arith.cmpi eq, %0, %24 : vector<8x128xi32>
    %26 = arith.select %25, %6, %20 : vector<8x128xi1>, vector<8x128xf32>
    %27 = arith.select %25, %14, %21 : vector<8x128xi1>, vector<8x128xf32>
    %cst_9 = arith.constant 1.000000e+00 : f32
    %28 = vector.broadcast %cst_9 : f32 to vector<8x128xf32>
    %29 = arith.select %25, %28, %23 : vector<8x128xi1>, vector<8x128xf32>
    %30 = arith.subf %8, %26 : vector<8x128xf32>
    %31 = math.log %16 : vector<8x128xf32>
    %32 = arith.addf %30, %31 : vector<8x128xf32>
    %33 = tpu.reciprocal %16 {approx = true} : vector<8x128xf32> -> vector<8x128xf32>
    %34 = arith.mulf %16, %33 : vector<8x128xf32>
    %cst_10 = arith.constant 2.000000e+00 : f32
    %35 = vector.broadcast %cst_10 : f32 to vector<8x128xf32>
    %36 = arith.subf %35, %34 : vector<8x128xf32>
    %37 = arith.mulf %33, %36 : vector<8x128xf32>
    %38 = arith.subf %16, %27 : vector<8x128xf32>
    %39 = arith.mulf %38, %37 : vector<8x128xf32>
    %40 = arith.mulf %39, %39 : vector<8x128xf32>
    %41 = math.sqrt %39 : vector<8x128xf32>
    %42 = arith.mulf %40, %41 : vector<8x128xf32>
    %43 = arith.mulf %29, %42 : vector<8x128xf32>
    %44 = arith.mulf %43, %32 : vector<8x128xf32>
    %c1024_i32 = arith.constant 1024 : i32
    %45 = arith.muli %arg0, %c1024_i32 : i32
    %46 = tpu.iota {dimensions = array<i32: 0>} : vector<8x128xi32>
    %c128_i32 = arith.constant 128 : i32
    %47 = vector.broadcast %c128_i32 : i32 to vector<8x128xi32>
    %48 = arith.muli %46, %47 : vector<8x128xi32>
    %49 = vector.broadcast %45 : i32 to vector<8x128xi32>
    %50 = arith.addi %49, %48 : vector<8x128xi32>
    %51 = tpu.iota {dimensions = array<i32: 1>} : vector<8x128xi32>
    %52 = arith.addi %50, %51 : vector<8x128xi32>
    %c8_i32 = arith.constant 8 : i32
    %53 = vector.broadcast %c8_i32 : i32 to vector<8x128xi32>
    %54 = arith.cmpi slt, %52, %53 : vector<8x128xi32>
    %cst_11 = arith.constant 0.000000e+00 : f32
    %55 = vector.broadcast %cst_11 : f32 to vector<8x128xf32>
    %56 = arith.select %54, %44, %55 : vector<8x128xi1>, vector<8x128xf32>
    %57 = vector.shape_cast %56 : vector<8x128xf32> to vector<1x8x128xf32>
    %cst_12 = arith.constant dense<0.000000e+00> : vector<1xf32>
    %58 = vector.multi_reduction <add>, %57, %cst_12 [1, 2] : vector<1x8x128xf32> to vector<1xf32>
    %59 = vector.shape_cast %58 : vector<1xf32> to vector<1x1x1xf32>
    %60 = vector.extract %59[0, 0, 0] : f32 from vector<1x1x1xf32>
    %61 = vector.broadcast %60 : f32 to vector<1x1x1xf32>
    %c0_13 = arith.constant 0 : index
    %c0_14 = arith.constant 0 : index
    %c0_15 = arith.constant 0 : index
    %62 = vector.load %arg3[%c0_13, %c0_14, %c0_15] : memref<1x1x1xf32, #tpu.memory_space<vmem>>, vector<1x1x1xf32>
    tpu.vector_store %arg3[%c0_13, %c0_14, %c0_15], %61 {strides = array<i32>} : memref<1x1x1xf32, #tpu.memory_space<vmem>>, vector<1x1x1xf32>,
    return
  }
  func.func @transform_0(%arg0: i32) -> (i32, i32, i32) {
    %c0_i32 = arith.constant 0 : i32
    %c0_i32_0 = arith.constant 0 : i32
    %c0_i32_1 = arith.constant 0 : i32
    return %c0_i32, %arg0, %c0_i32_0 : i32, i32, i32
  }
  func.func @transform_1(%arg0: i32) -> (i32, i32) {
    %c0_i32 = arith.constant 0 : i32
    %c0_i32_0 = arith.constant 0 : i32
    return %arg0, %c0_i32 : i32, i32
  }
  func.func @transform_2(%arg0: i32) -> (i32, i32, i32) {
    %c0_i32 = arith.constant 0 : i32
    %c0_i32_0 = arith.constant 0 : i32
    %c0_i32_1 = arith.constant 0 : i32
    return %arg0, %c0_i32, %c0_i32_0 : i32, i32, i32
  }
}

</mosaic_0001>

<llo_original>
// kernel: tpu_custom_call.1
$region0: #{tpu_custom_call.1}
  #allocation0 [shape = 'u32[]', space=smem, size = 0x4, offset = 0x4, fixed_abs, tag = 'smem constant byte address 0x4 - core index']
  #allocation1 [shape = 'u32[144,128]{1,0:T(1,128)}', space=vmem, size = 0x12000, scoped, tag = 'internal scratch']
  %s0 = inlined_call_operand.hbm [shape: f32[3,8,128], index: 0, kind: input, shape index: {}]
  %s1 = inlined_call_operand.hbm [shape: s32[8,128], index: 1, kind: input, shape index: {}]
  %s2 = inlined_call_operand.hbm [shape: f32[1,1,1], index: 2, kind: output, shape index: {}]
  %s3 = sld [smem:[#allocation0]]
  $region26: #{tpu_custom_call.1} parent=0
    _
  %s5 = ssub.s32 1, %s3
  %s6 = scalar_select 0, %s5, %s3
  $region1: #{tpu_custom_call.1} parent=0
    #allocation2 [shape = 'u8[12288]{0}', space=vmem, size = 0x3000, scoped, tag = 'input window, operand 0, single buffered']
    #allocation3 [shape = 's32[1]{0}', space=sflag, size = 0x4, scoped, tag = 'scoped memory for tpu_custom_call.1']
    #allocation4 [shape = 's32[1]{0}', space=sflag, size = 0x4, scoped, tag = 'scoped memory for tpu_custom_call.1']
    #allocation5 [shape = 'u8[4096]{0}', space=vmem, size = 0x1000, scoped, tag = 'input window, operand 1, single buffered']
    #allocation6 [shape = 's32[1]{0}', space=sflag, size = 0x4, scoped, tag = 'scoped memory for tpu_custom_call.1']
    #allocation7 [shape = 'u8[512]{0}', space=vmem, size = 0x400, scoped, tag = 'output window, operand 0, single buffered']
    %7 = vsyncpa [#allocation3], 0
    %8 = vsyncpa [#allocation6], 0
    %9 = vsyncpa [#allocation4], 0
    // Predicated region
    $region2: #{tpu_custom_call.1} parent=1 // pred_check
      _
    $region3: #{tpu_custom_call.1} parent=1 // pred_check_branch
      %11 = sbr.rel (0) target = $region5
    $region4: #{tpu_custom_call.1} parent=1 // pred_region
      %s13 = ssub.s32 384, 384
      %14 = vsyncadd [#allocation3], %s13
      %s15 = sshll.u32 [#allocation2], 4
      %s16 = int_to_ptr.vmem [resolvable:$true] %s15
      %21 = dma.hbm_to_vmem [thread:$0]  %s0, 384, %s16, [#allocation3], 128, 128, 8
    $region5: #{tpu_custom_call.1} parent=1 // pred_fallthru
      _
    // Predicated region
    $region6: #{tpu_custom_call.1} parent=1 // pred_check
      _
    $region7: #{tpu_custom_call.1} parent=1 // pred_check_branch
      %23 = sbr.rel (0) target = $region9
    $region8: #{tpu_custom_call.1} parent=1 // pred_region
      %s25 = ssub.s32 128, 128
      %26 = vsyncadd [#allocation6], %s25
      %s28 = sshll.u32 [#allocation5], 4
      %s29 = int_to_ptr.vmem [resolvable:$true] %s28
      %31 = dma.hbm_to_vmem [thread:$0]  %s1, 128, %s29, [#allocation6]
    $region9: #{tpu_custom_call.1} parent=1 // pred_fallthru
      _
    // Predicated region
    $region10: #{tpu_custom_call.1} parent=1 // pred_check
      _
    $region11: #{tpu_custom_call.1} parent=1 // pred_check_branch
      %33 = sbr.rel (0) target = $region13
    $region12: #{tpu_custom_call.1} parent=1 // pred_region
      %34 = dma.done [#allocation3], 384
    $region13: #{tpu_custom_call.1} parent=1 // pred_fallthru
      _
    // Predicated region
    $region14: #{tpu_custom_call.1} parent=1 // pred_check
      _
    $region15: #{tpu_custom_call.1} parent=1 // pred_check_branch
      %36 = sbr.rel (0) target = $region17
    $region16: #{tpu_custom_call.1} parent=1 // pred_region
      %37 = dma.done [#allocation6], 128
    $region17: #{tpu_custom_call.1} parent=1 // pred_fallthru
      _
    %v38 = vld [vmem:[#allocation5] sm:$0xff]
    %v39 = vld [vmem:[#allocation2] sm:$0xff]
    %s40 = scalar_lea.vmem [#allocation2], 8
    %v41 = vld [vmem:[%s40] sm:$0xff]
    %s42 = scalar_lea.vmem [#allocation2], 16
    %v43 = vld [vmem:[%s42] sm:$0xff]
    %v44 = vmax.f32 %v39, %v41
    %v45 = vmax.f32 %v44, %v43
    %v46 = vsub.f32 %v39, %v45
    %v47 = vmul.f32 %v46, 1.442695
    %v48 = vpow.pop %v47
    %v49 = vsub.f32 %v41, %v45
    %v50 = vmul.f32 %v49, 1.442695
    %v51 = vpow.pop %v50
    %v52 = vsub.f32 %v43, %v45
    %v53 = vmul.f32 %v52, 1.442695
    %v54 = vpow.pop %v53
    %v55 = vadd.f32 %v48, %v51
    %v56 = vadd.f32 %v55, %v54
    %vm57 = vcmp.eq.s32.totalorder %v38, 1
    %v58 = vsel %vm57, %v41, %v39
    %v59 = vsel %vm57, %v51, %v48
    %vm60 = vcmp.eq.s32.totalorder %v38, 2
    %v61 = vsel %vm60, %v43, %v58
    %v62 = vsel %vm60, %v54, %v59
    %v63 = vsub.f32 %v45, %v61
    %v64 = vlog2.pop %v56
    %v65 = vmul.f32 %v64, 0.6931472
    %v66 = vadd.f32 %v63, %v65
    %v67 = vrcp.pop %v56
    %v68 = vmul.f32 %v56, %v67
    %v69 = vsub.f32 2.0, %v68
    %v70 = vmul.f32 %v67, %v69
    %v71 = vsub.f32 %v56, %v62
    %v72 = vmul.f32 %v71, %v70
    %v73 = vmul.f32 %v72, %v72
    %v74 = vrsqrt.pop %v72
    %v75 = vmul.f32 %v72, %v74
    %vm76 = vcmp.eq.f32.partialorder %v72, inf
    %v77 = vsel %vm76, %v72, %v75
    %vm78 = vcmp.eq.f32.partialorder %v72, 0.0
    %v79 = vand.u32 %v72, 2147483648
    %v80 = vsel %vm78, %v79, %v77
    %v81 = vmul.f32 %v73, %v80
    %v82 = vmul.f32 %v81, %v66
    %s83 = smul.u32 0, 1024
    %v84 = vlaneseq
    %v85 = vshrl.u32 %v84, 7
    %v86 = vmul.u32 %v85, 128
    %v87 = vstv %s83
    %v88 = vadd.s32 %v87, %v86
    %v89 = vlaneseq
    %v90 = vand.u32 %v89, 127
    %v91 = vadd.s32 %v88, %v90
    %vm92 = vcmp.lt.s32.totalorder %v91, 8
    %v93 = vsel %vm92, %v82, 0.0
    %94 = vadd.xlane.f32.xlu0 %v93
    %v95 = vpop.xlane.xlu0 %94
    %v96 = vrot.slane %v95, 4
    %v97 = vadd.f32 %v95, %v96
    %v98 = vrot.slane %v97, 2
    %v99 = vadd.f32 %v97, %v98
    %v100 = vrot.slane %v99, 1
    %v101 = vadd.f32 %v99, %v100
    %s102 = vtos %v101
    %v103 = vstv %s102
    %vm104 = vcmask 0
    %105 = vst.msk [vmem:[#allocation7] sm:$0x1] %vm104, %v103
    // Predicated region
    $region18: #{tpu_custom_call.1} parent=1 // pred_check
      _
    $region19: #{tpu_custom_call.1} parent=1 // pred_check_branch
      %107 = sbr.rel (0) target = $region21
    $region20: #{tpu_custom_call.1} parent=1 // pred_region
      %s109 = ssub.s32 16, 16
      %110 = vsyncadd [#allocation4], %s109
      %s112 = sshll.u32 [#allocation7], 4
      %s113 = int_to_ptr.vmem [resolvable:$true] %s112
      %115 = dma.vmem_to_hbm [thread:$0]  %s113, 16, %s2, [#allocation4]
    $region21: #{tpu_custom_call.1} parent=1 // pred_fallthru
      _
    // Predicated region
    $region22: #{tpu_custom_call.1} parent=1 // pred_check
      _
    $region23: #{tpu_custom_call.1} parent=1 // pred_check_branch
      %117 = sbr.rel (0) target = $region25
    $region24: #{tpu_custom_call.1} parent=1 // pred_region
      %118 = dma.done [#allocation4], 16
    $region25: #{tpu_custom_call.1} parent=1 // pred_fallthru
      _
    %119 = vsyncpa [#allocation3], 1
    %120 = vsyncpa [#allocation6], 1
    %121 = vsyncpa [#allocation4], 1

</llo_original>
